<compile_context>
chip_gen: v7x
topology: tpu7x:2x2x1
jax: 0.10.0
libtpu: 0.0.40
codegen_flags: <defaults>
</compile_context>

<pallas_src>
import jax
import jax.numpy as jnp
from jax.experimental import pallas as pl
from jax.experimental.pallas import tpu as pltpu


def _round_up(x, m):
    return ((x + m - 1) // m) * m


def _make_mlp_kernel(bn):
    """Fused 1x1-conv MLP body: fc1 -> ReLU6 -> (Dropout p=0) -> fc2."""

    def kernel(x_ref, w1_ref, b1_ref, w2_ref, b2_ref, o_ref):
        # x_ref:  (bn, Cin, tp)  channels on sublanes, pixels on lanes (lane-dense)
        # w1_ref: (Chid, Cin)    fc1 weight (native PyTorch layout, out x in)
        # b1_ref: (Chid, 1)
        # w2_ref: (Cout, Chid)   fc2 weight
        # b2_ref: (Cout, 1)
        # o_ref:  (bn, Cout, tp) lane-dense output tile (no masked partial stores)
        w1 = w1_ref[...]
        b1 = b1_ref[...]
        w2 = w2_ref[...]
        b2 = b2_ref[...]
        for i in range(bn):  # bn is small (<= 8) and static
            x = x_ref[i]  # (Cin, tp)
            # fc1: per-pixel linear over channels, f32 accumulation, bias
            # broadcast along the lane (pixel) axis.
            h = jnp.dot(w1, x, preferred_element_type=jnp.float32) + b1
            # ReLU6; Dropout(p=0.0) is the identity -> no-op.
            h = jnp.clip(h, 0.0, 6.0)
            # fc2: keep h in f32 (no intermediate downcast).
            out = jnp.dot(w2, h, preferred_element_type=jnp.float32) + b2
            o_ref[i] = out.astype(o_ref.dtype)

    return kernel


def _pick_tiling(N, P_pad, cin, chid, cout):
    """Choose (bn, tp) for the (batch-block, pixel-tile) grid.

    - tp is a multiple of 128 that divides P_pad (no extra padding), as large
      as possible up to ~32K lanes and a ~20 MiB VMEM pipeline budget.
    - bn blocks batch rows together when the per-image tile is small, keeping
      per-step HBM traffic around ~2 MiB, but never collapsing the grid below
      2 steps when >= 2 steps are possible (v7x megacore).
    """
    cin_p = _round_up(cin, 8)
    chid_p = _round_up(chid, 8)
    cout_p = _round_up(cout, 8)

    # Per-pixel-column VMEM bytes: double-buffered x + out, plus hidden scratch.
    per_px = 4 * (2 * cin_p + 2 * cout_p + 2 * chid_p)
    budget = 20 << 20
    tp_cap = max(128, min(32768, ((budget // per_px) // 128) * 128))

    # Largest multiple of 128 that divides P_pad and is <= tp_cap.
    n128 = P_pad // 128
    best = 1
    d = 1
    while d * d <= n128:
        if n128 % d == 0:
            for c in (d, n128 // d):
                if c * 128 <= tp_cap and c > best:
                    best = c
        d += 1
    tp = best * 128
    n_ptiles = P_pad // tp

    # Keep >= 2 total grid steps when possible so both v7x TCs get work.
    if N * n_ptiles < 2 and n_ptiles == 1 and n128 >= 2 and n128 % 2 == 0:
        tp = (n128 // 2) * 128
        n_ptiles = 2

    # Block batch rows per step when the whole image fits in one tile and the
    # per-step traffic is still small; cap static unroll at 8 and keep >= 2 steps.
    bn = 1
    if n_ptiles == 1 and N > 1:
        bytes_per_row = 4 * (cin + cout + chid) * tp
        want = max(1, int((2 << 20) // max(bytes_per_row, 1)))
        want = min(want, 8, N)
        for cand in range(want, 0, -1):
            if N % cand == 0 and (N // cand) >= 2:
                bn = cand
                break

    return bn, tp, n_ptiles


def mlp_pallas(x_nchw, w1, b1, w2, b2):
    """Fused 1x1-conv MLP (fc1 -> ReLU6 -> fc2), computed in native NCHW layout.

    x_nchw: (N, Cin, H, W) float32
    w1: (Chid, Cin)  b1: (Chid,)   -- fc1 (Conv2d 1x1) params
    w2: (Cout, Chid) b2: (Cout,)   -- fc2 (Conv2d 1x1) params
    returns (N, Cout, H, W)
    """
    N, Cin, H, W = x_nchw.shape
    Chid = w1.shape[0]
    Cout = w2.shape[0]
    P = H * W

    # Pad the pixel axis only to a multiple of 128 (usually a no-op), never to
    # a multiple of the tile: the tile is chosen to divide P_pad instead.
    P_pad = _round_up(P, 128)

    bn, tp, n_ptiles = _pick_tiling(N, P_pad, Cin, Chid, Cout)

    # (N, Cin, H, W) -> (N, Cin, H*W): free reshape, no transpose, no HBM pass.
    x3 = x_nchw.reshape(N, Cin, P)
    if P_pad != P:
        # Only a (P_pad - P) < 128 lane pad; padded pixels are sliced off below.
        x3 = jnp.pad(x3, ((0, 0), (0, 0), (0, P_pad - P)))

    b1_c = b1.reshape(Chid, 1)
    b2_c = b2.reshape(Cout, 1)

    # VMEM: double-buffered x/out tiles + f32 hidden scratch + small weights.
    cin_p = _round_up(Cin, 8)
    chid_p = _round_up(Chid, 8)
    cout_p = _round_up(Cout, 8)
    tile_bytes = 4 * bn * tp * (2 * (cin_p + cout_p) + 2 * chid_p)
    vmem_limit = int(min(48 << 20, max(32 << 20, tile_bytes + (4 << 20))))

    grid = (N // bn, n_ptiles)

    out = pl.pallas_call(
        _make_mlp_kernel(bn),
        out_shape=jax.ShapeDtypeStruct((N, Cout, P_pad), x_nchw.dtype),
        grid=grid,
        in_specs=[
            pl.BlockSpec((bn, Cin, tp), lambda n, j: (n, 0, j)),
            pl.BlockSpec((Chid, Cin), lambda n, j: (0, 0)),
            pl.BlockSpec((Chid, 1), lambda n, j: (0, 0)),
            pl.BlockSpec((Cout, Chid), lambda n, j: (0, 0)),
            pl.BlockSpec((Cout, 1), lambda n, j: (0, 0)),
        ],
        out_specs=pl.BlockSpec((bn, Cout, tp), lambda n, j: (n, 0, j)),
        compiler_params=pltpu.CompilerParams(
            # Both grid axes are independent -> shard across the 2 TCs on v7x.
            dimension_semantics=("parallel", "parallel"),
            vmem_limit_bytes=vmem_limit,
        ),
    )(x3, w1, b1_c, w2, b2_c)

    if P_pad != P:
        out = out[:, :, :P]
    return out.reshape(N, Cout, H, W)


def _reference(x_nchw, w1, b1, w2, b2):
    # plain-JAX reference of the same forward pass
    x = jnp.transpose(x_nchw, (0, 2, 3, 1))  # NHWC
    h = jnp.einsum("nhwc,oc->nhwo", x, w1) + b1
    h = jnp.clip(h, 0.0, 6.0)
    o = jnp.einsum("nhwc,oc->nhwo", h, w2) + b2
    return jnp.transpose(o, (0, 3, 1, 2))


if __name__ == "__main__":
    key = jax.random.PRNGKey(0)
    kx, k1, k2, k3, k4 = jax.random.split(key, 5)

    # Mlp(in_features=4, hidden_features=8, out_features=4)
    N, Cin, H, W = 2, 4, 16, 16
    Chid, Cout = 8, 4

    x = jax.random.normal(kx, (N, Cin, H, W), dtype=jnp.float32)

    # Deterministic parameter init (uniform, roughly Conv2d default scale).
    s1 = 1.0 / (Cin ** 0.5)
    s2 = 1.0 / (Chid ** 0.5)
    w1 = jax.random.uniform(k1, (Chid, Cin), minval=-s1, maxval=s1, dtype=jnp.float32)
    b1 = jax.random.uniform(k2, (Chid,), minval=-s1, maxval=s1, dtype=jnp.float32)
    w2 = jax.random.uniform(k3, (Cout, Chid), minval=-s2, maxval=s2, dtype=jnp.float32)
    b2 = jax.random.uniform(k4, (Cout,), minval=-s2, maxval=s2, dtype=jnp.float32)

    out = mlp_pallas(x, w1, b1, w2, b2)
    out = jax.block_until_ready(out)

    ref = _reference(x, w1, b1, w2, b2)
    assert out.shape == (N, Cout, H, W)
    assert jnp.allclose(out, ref, atol=1e-5, rtol=1e-5)

    print("KERNEL_OK")
</pallas_src>

<mosaic_0001>
module attributes {stable_mosaic.version = 11 : i64} {
  func.func @kernel(%arg0: i32, %arg1: i32, %arg2: memref<1x4x256xf32, #tpu.memory_space<vmem>>, %arg3: memref<8x4xf32, #tpu.memory_space<vmem>>, %arg4: memref<8x1xf32, #tpu.memory_space<vmem>>, %arg5: memref<4x8xf32, #tpu.memory_space<vmem>>, %arg6: memref<4x1xf32, #tpu.memory_space<vmem>>, %arg7: memref<1x4x256xf32, #tpu.memory_space<vmem>>) attributes {dimension_semantics = [#tpu.dimension_semantics<parallel>, #tpu.dimension_semantics<parallel>], iteration_bounds = array<i64: 2, 1>, scalar_prefetch = 0 : i64, scratch_operands = 0 : i64, tpu.core_type = #tpu.core_type<tc>, window_params = [{transform_indices = @transform_0, window_bounds = array<i64: 1, 4, 256>}, {pipeline_mode = #tpu.pipeline_mode<synchronous>, transform_indices = @transform_1, window_bounds = array<i64: 8, 4>}, {pipeline_mode = #tpu.pipeline_mode<synchronous>, transform_indices = @transform_2, window_bounds = array<i64: 8, 1>}, {pipeline_mode = #tpu.pipeline_mode<synchronous>, transform_indices = @transform_3, window_bounds = array<i64: 4, 8>}, {pipeline_mode = #tpu.pipeline_mode<synchronous>, transform_indices = @transform_4, window_bounds = array<i64: 4, 1>}, {transform_indices = @transform_5, window_bounds = array<i64: 1, 4, 256>}]} {
    %c0 = arith.constant 0 : index
    %c0_0 = arith.constant 0 : index
    %0 = vector.load %arg3[%c0, %c0_0] : memref<8x4xf32, #tpu.memory_space<vmem>>, vector<8x4xf32>
    %c0_1 = arith.constant 0 : index
    %c0_2 = arith.constant 0 : index
    %1 = vector.load %arg4[%c0_1, %c0_2] : memref<8x1xf32, #tpu.memory_space<vmem>>, vector<8x1xf32>
    %c0_3 = arith.constant 0 : index
    %c0_4 = arith.constant 0 : index
    %2 = vector.load %arg5[%c0_3, %c0_4] : memref<4x8xf32, #tpu.memory_space<vmem>>, vector<4x8xf32>
    %c0_5 = arith.constant 0 : index
    %c0_6 = arith.constant 0 : index
    %3 = vector.load %arg6[%c0_5, %c0_6] : memref<4x1xf32, #tpu.memory_space<vmem>>, vector<4x1xf32>
    %c0_7 = arith.constant 0 : index
    %c0_8 = arith.constant 0 : index
    %c0_9 = arith.constant 0 : index
    %4 = vector.load %arg2[%c0_7, %c0_8, %c0_9] : memref<1x4x256xf32, #tpu.memory_space<vmem>>, vector<1x4x256xf32>
    %5 = vector.shape_cast %4 : vector<1x4x256xf32> to vector<4x256xf32>
    %cst = arith.constant dense<0.000000e+00> : vector<8x256xf32>
    %6 = tpu.matmul %0, %5, %cst {dimension_numbers = #tpu.dot_dimension_numbers<[1], [0], [0], [1], [0, 0, 1, 1], [], []>} : vector<8x4xf32>, vector<4x256xf32>, vector<8x256xf32> -> vector<8x256xf32>
    %7 = vector.broadcast %1 : vector<8x1xf32> to vector<8x256xf32>
    %8 = arith.addf %6, %7 : vector<8x256xf32>
    %cst_10 = arith.constant 0.000000e+00 : f32
    %cst_11 = arith.constant 6.000000e+00 : f32
    %9 = vector.broadcast %cst_10 : f32 to vector<8x256xf32>
    %10 = arith.maximumf %9, %8 : vector<8x256xf32>
    %11 = vector.broadcast %cst_11 : f32 to vector<8x256xf32>
    %12 = arith.minimumf %11, %10 : vector<8x256xf32>
    %cst_12 = arith.constant dense<0.000000e+00> : vector<4x256xf32>
    %13 = tpu.matmul %2, %12, %cst_12 {dimension_numbers = #tpu.dot_dimension_numbers<[1], [0], [0], [1], [0, 0, 1, 1], [], []>} : vector<4x8xf32>, vector<8x256xf32>, vector<4x256xf32> -> vector<4x256xf32>
    %14 = vector.broadcast %3 : vector<4x1xf32> to vector<4x256xf32>
    %15 = arith.addf %13, %14 : vector<4x256xf32>
    %c0_13 = arith.constant 0 : index
    %c0_14 = arith.constant 0 : index
    %c0_15 = arith.constant 0 : index
    %16 = vector.load %arg7[%c0_13, %c0_14, %c0_15] : memref<1x4x256xf32, #tpu.memory_space<vmem>>, vector<1x4x256xf32>
    %17 = vector.shape_cast %16 : vector<1x4x256xf32> to vector<4x256xf32>
    %18 = vector.shape_cast %15 : vector<4x256xf32> to vector<1x4x256xf32>
    tpu.vector_store %arg7[%c0_13, %c0_14, %c0_15], %18 {strides = array<i32>} : memref<1x4x256xf32, #tpu.memory_space<vmem>>, vector<1x4x256xf32>,
    return
  }
  func.func @transform_0(%arg0: i32, %arg1: i32) -> (i32, i32, i32) {
    %c0_i32 = arith.constant 0 : i32
    %c0_i32_0 = arith.constant 0 : i32
    return %arg0, %c0_i32, %arg1 : i32, i32, i32
  }
  func.func @transform_1(%arg0: i32, %arg1: i32) -> (i32, i32) {
    %c0_i32 = arith.constant 0 : i32
    %c0_i32_0 = arith.constant 0 : i32
    %c0_i32_1 = arith.constant 0 : i32
    return %c0_i32, %c0_i32_0 : i32, i32
  }
  func.func @transform_2(%arg0: i32, %arg1: i32) -> (i32, i32) {
    %c0_i32 = arith.constant 0 : i32
    %c0_i32_0 = arith.constant 0 : i32
    %c0_i32_1 = arith.constant 0 : i32
    return %c0_i32, %c0_i32_0 : i32, i32
  }
  func.func @transform_3(%arg0: i32, %arg1: i32) -> (i32, i32) {
    %c0_i32 = arith.constant 0 : i32
    %c0_i32_0 = arith.constant 0 : i32
    %c0_i32_1 = arith.constant 0 : i32
    return %c0_i32, %c0_i32_0 : i32, i32
  }
  func.func @transform_4(%arg0: i32, %arg1: i32) -> (i32, i32) {
    %c0_i32 = arith.constant 0 : i32
    %c0_i32_0 = arith.constant 0 : i32
    %c0_i32_1 = arith.constant 0 : i32
    return %c0_i32, %c0_i32_0 : i32, i32
  }
  func.func @transform_5(%arg0: i32, %arg1: i32) -> (i32, i32, i32) {
    %c0_i32 = arith.constant 0 : i32
    %c0_i32_0 = arith.constant 0 : i32
    return %arg0, %c0_i32, %arg1 : i32, i32, i32
  }
}

</mosaic_0001>

<llo_original>
// kernel: tpu_custom_call.1
$region0: #{tpu_custom_call.1}
  #allocation0 [shape = 'u32[]', space=smem, size = 0x4, offset = 0x4, fixed_abs, tag = 'smem constant byte address 0x4 - core index']
  #allocation1 [shape = 'u32[144,128]{1,0:T(1,128)}', space=vmem, size = 0x12000, scoped, tag = 'internal scratch']
  %s0 = inlined_call_operand.vmem [shape: f32[2,4,256], index: 0, kind: input, shape index: {}]
  %s1 = inlined_call_operand.vmem [shape: f32[8,4], index: 1, kind: input, shape index: {}]
  %s2 = inlined_call_operand.vmem [shape: f32[8,1], index: 2, kind: input, shape index: {}]
  %s3 = inlined_call_operand.vmem [shape: f32[4,8], index: 3, kind: input, shape index: {}]
  %s4 = inlined_call_operand.vmem [shape: f32[4,1], index: 4, kind: input, shape index: {}]
  %s5 = inlined_call_operand.hbm [shape: f32[2,4,256], index: 5, kind: output, shape index: {}]
  %s6 = sld [smem:[#allocation0]]
  $region53: #{tpu_custom_call.1} parent=0
    _
  %s8 = ssub.s32 1, %s6
  %s9 = scalar_select 0, %s8, %s6
  $region1: #{tpu_custom_call.1} parent=0
    #allocation2 [shape = 'u8[8192]{0}', space=vmem, size = 0x2000, scoped, tag = 'output window, operand 0']
    #allocation3 [shape = 's32[2]{0}', space=sflag, size = 0x8, scoped, tag = 'scoped memory for tpu_custom_call.1']
    %10 = vsyncpa [#allocation3], 0
    %s11 = scalar_lea.sflag [#allocation3], 1
    %12 = vsyncpa %s11, 0
    loop: start=0, step=1, limit=4
    $region2: #{tpu_custom_call.1} parent=1 // loop_pre_header
      _
    $region3: #{tpu_custom_call.1} parent=1 // loop_header
      %s14 = sphi 0, %s18
      %p15 = scmp.ge.s32.totalorder %s14, 4
      %s21 = sphi 0, %s33
      %s22 = sphi 0, %s29
      %s23 = sphi 0, %s21
      %s24 = sphi 0, %s22
      %s25 = sphi 0, %s23
      %s26 = sphi 0, %s24
      %s38 = sphi 0, %s40
      %s41 = sphi 0, %s38
      %s42 = sphi 0, %s41
      %s58 = sphi 0, %s42
      %s62 = sphi 0, %s62
      %s64 = sphi 0, %s62
      %s65 = sphi 0, %s64
      %s79 = sphi 0, %s65
      %s83 = sphi 0, %s83
      %s85 = sphi 0, %s83
      %s86 = sphi 0, %s85
      %s100 = sphi 0, %s86
      %s104 = sphi 0, %s104
      %s106 = sphi 0, %s104
      %s107 = sphi 0, %s106
      %s121 = sphi 0, %s107
      %s125 = sphi 0, %s125
      %s127 = sphi 0, %s125
      %s128 = sphi 0, %s127
      %s142 = sphi 0, %s128
      %s150 = sphi 0, %s152
      %s153 = sphi 0, %s150
      %s154 = sphi 0, %s153
      %s170 = sphi 0, %s154
    $region4: #{tpu_custom_call.1} parent=1 // loop_header_branch
      %17 = sbr.rel (%p15) target = $region8
    $region5: #{tpu_custom_call.1} parent=1 // loop_body
      %s19 = ssub.s32 %s14, 1
      %s20 = ssub.s32 %s14, 2
      %s27 = sadd.s32 1, %s22
      %p28 = scmp.ge.s32.totalorder %s27, 1
      %s29 = scalar_select %p28, 0, %s27
      %s30 = sadd.s32 1, %s21
      %s31 = scalar_select %p28, %s30, %s21
      %p32 = scmp.ge.s32.totalorder %s31, 2
      %s33 = scalar_select %p32, 0, %s31
      %s34 = ssub.s32 %s21, %s33
      %s35 = ssub.s32 %s22, %s29
      %s36 = sor.u32 %s34, %s35
      %p37 = scmp.eq.s32.totalorder %s36, 0
      %s39 = sadd.s32 %s38, 1
      %s40 = scalar_select %p37, %s38, %s39
      %p43 = pneg %p37
      %p44 = scmp.eq.s32.totalorder %s14, 1
      %p45 = por %p43, %p44
      %p46 = scmp.ne.s32.totalorder %s38, %s41
      %p47 = scmp.eq.s32.totalorder %s14, 0
      %p48 = por %p46, %p47
      %p49 = scmp.ne.s32.totalorder %s38, %s41
      %p50 = scmp.eq.s32.totalorder %s19, 1
      %p51 = por %p49, %p50
      %p52 = scmp.ne.s32.totalorder %s41, %s42
      %p53 = scmp.eq.s32.totalorder %s19, 0
      %p54 = por %p52, %p53
      %p55 = scmp.ne.s32.totalorder %s41, %s42
      %p56 = scmp.eq.s32.totalorder %s20, 1
      %p57 = por %p55, %p56
      %p59 = scmp.ne.s32.totalorder %s42, %s58
      %p60 = scmp.eq.s32.totalorder %s20, 0
      %p61 = por %p59, %p60
      %s63 = sadd.s32 %s62, 1
      %p66 = scmp.eq.s32.totalorder %s14, 1
      %p67 = scmp.ne.s32.totalorder %s62, %s64
      %p68 = scmp.eq.s32.totalorder %s14, 0
      %p69 = por %p67, %p68
      %p70 = scmp.ne.s32.totalorder %s62, %s64
      %p71 = scmp.eq.s32.totalorder %s19, 1
      %p72 = por %p70, %p71
      %p73 = scmp.ne.s32.totalorder %s64, %s65
      %p74 = scmp.eq.s32.totalorder %s19, 0
      %p75 = por %p73, %p74
      %p76 = scmp.ne.s32.totalorder %s64, %s65
      %p77 = scmp.eq.s32.totalorder %s20, 1
      %p78 = por %p76, %p77
      %p80 = scmp.ne.s32.totalorder %s65, %s79
      %p81 = scmp.eq.s32.totalorder %s20, 0
      %p82 = por %p80, %p81
      %s84 = sadd.s32 %s83, 1
      %p87 = scmp.eq.s32.totalorder %s14, 1
      %p88 = scmp.ne.s32.totalorder %s83, %s85
      %p89 = scmp.eq.s32.totalorder %s14, 0
      %p90 = por %p88, %p89
      %p91 = scmp.ne.s32.totalorder %s83, %s85
      %p92 = scmp.eq.s32.totalorder %s19, 1
      %p93 = por %p91, %p92
      %p94 = scmp.ne.s32.totalorder %s85, %s86
      %p95 = scmp.eq.s32.totalorder %s19, 0
      %p96 = por %p94, %p95
      %p97 = scmp.ne.s32.totalorder %s85, %s86
      %p98 = scmp.eq.s32.totalorder %s20, 1
      %p99 = por %p97, %p98
      %p101 = scmp.ne.s32.totalorder %s86, %s100
      %p102 = scmp.eq.s32.totalorder %s20, 0
      %p103 = por %p101, %p102
      %s105 = sadd.s32 %s104, 1
      %p108 = scmp.eq.s32.totalorder %s14, 1
      %p109 = scmp.ne.s32.totalorder %s104, %s106
      %p110 = scmp.eq.s32.totalorder %s14, 0
      %p111 = por %p109, %p110
      %p112 = scmp.ne.s32.totalorder %s104, %s106
      %p113 = scmp.eq.s32.totalorder %s19, 1
      %p114 = por %p112, %p113
      %p115 = scmp.ne.s32.totalorder %s106, %s107
      %p116 = scmp.eq.s32.totalorder %s19, 0
      %p117 = por %p115, %p116
      %p118 = scmp.ne.s32.totalorder %s106, %s107
      %p119 = scmp.eq.s32.totalorder %s20, 1
      %p120 = por %p118, %p119
      %p122 = scmp.ne.s32.totalorder %s107, %s121
      %p123 = scmp.eq.s32.totalorder %s20, 0
      %p124 = por %p122, %p123
      %s126 = sadd.s32 %s125, 1
      %p129 = scmp.eq.s32.totalorder %s14, 1
      %p130 = scmp.ne.s32.totalorder %s125, %s127
      %p131 = scmp.eq.s32.totalorder %s14, 0
      %p132 = por %p130, %p131
      %p133 = scmp.ne.s32.totalorder %s125, %s127
      %p134 = scmp.eq.s32.totalorder %s19, 1
      %p135 = por %p133, %p134
      %p136 = scmp.ne.s32.totalorder %s127, %s128
      %p137 = scmp.eq.s32.totalorder %s19, 0
      %p138 = por %p136, %p137
      %p139 = scmp.ne.s32.totalorder %s127, %s128
      %p140 = scmp.eq.s32.totalorder %s20, 1
      %p141 = por %p139, %p140
      %p143 = scmp.ne.s32.totalorder %s128, %s142
      %p144 = scmp.eq.s32.totalorder %s20, 0
      %p145 = por %p143, %p144
      %s146 = ssub.s32 %s21, %s33
      %s147 = ssub.s32 %s22, %s29
      %s148 = sor.u32 %s146, %s147
      %p149 = scmp.eq.s32.totalorder %s148, 0
      %s151 = sadd.s32 %s150, 1
      %s152 = scalar_select %p149, %s150, %s151
      %p155 = pneg %p149
      %p156 = scmp.eq.s32.totalorder %s14, 1
      %p157 = por %p155, %p156
      %p158 = scmp.ne.s32.totalorder %s150, %s153
      %p159 = scmp.eq.s32.totalorder %s14, 0
      %p160 = por %p158, %p159
      %p161 = scmp.ne.s32.totalorder %s150, %s153
      %p162 = scmp.eq.s32.totalorder %s19, 1
      %p163 = por %p161, %p162
      %p164 = scmp.ne.s32.totalorder %s153, %s154
      %p165 = scmp.eq.s32.totalorder %s19, 0
      %p166 = por %p164, %p165
      %p167 = scmp.ne.s32.totalorder %s153, %s154
      %p168 = scmp.eq.s32.totalorder %s20, 1
      %p169 = por %p167, %p168
      %p171 = scmp.ne.s32.totalorder %s154, %s170
      %p172 = scmp.eq.s32.totalorder %s20, 0
      %p173 = por %p171, %p172
      %p174 = scmp.le.s32.totalorder 1, %s14
      %p175 = scmp.lt.s32.totalorder %s14, 3
      %p176 = pnand %p174, %p175
      %p177 = pneg %p176
      // Predicated region
      $region9: #{tpu_custom_call.1} parent=5 // pred_check
        _
      $region10: #{tpu_custom_call.1} parent=5 // pred_check_branch
        %179 = sbr.rel (%p176) target = $region12
      $region11: #{tpu_custom_call.1} parent=5 // pred_region
        %s180 = ssub.s32 %s14, 1
        // Predicated region
        $region13: #{tpu_custom_call.1} parent=11 // pred_check
          %p181 = pneg %p75
        $region14: #{tpu_custom_call.1} parent=11 // pred_check_branch
          %183 = sbr.rel (%p181) target = $region16
        $region15: #{tpu_custom_call.1} parent=11 // pred_region
          _
        $region16: #{tpu_custom_call.1} parent=11 // pred_fallthru
          _
        // Predicated region
        $region17: #{tpu_custom_call.1} parent=11 // pred_check
          %p184 = pneg %p96
        $region18: #{tpu_custom_call.1} parent=11 // pred_check_branch
          %186 = sbr.rel (%p184) target = $region20
        $region19: #{tpu_custom_call.1} parent=11 // pred_region
          _
        $region20: #{tpu_custom_call.1} parent=11 // pred_fallthru
          _
        // Predicated region
        $region21: #{tpu_custom_call.1} parent=11 // pred_check
          %p187 = pneg %p117
        $region22: #{tpu_custom_call.1} parent=11 // pred_check_branch
          %189 = sbr.rel (%p187) target = $region24
        $region23: #{tpu_custom_call.1} parent=11 // pred_region
          _
        $region24: #{tpu_custom_call.1} parent=11 // pred_fallthru
          _
        // Predicated region
        $region25: #{tpu_custom_call.1} parent=11 // pred_check
          %p190 = pneg %p138
        $region26: #{tpu_custom_call.1} parent=11 // pred_check_branch
          %192 = sbr.rel (%p190) target = $region28
        $region27: #{tpu_custom_call.1} parent=11 // pred_region
          _
        $region28: #{tpu_custom_call.1} parent=11 // pred_fallthru
          _
      $region12: #{tpu_custom_call.1} parent=5 // pred_fallthru
        _
      %p193 = scmp.lt.s32.totalorder %s14, 2
      // Predicated region
      $region29: #{tpu_custom_call.1} parent=5 // pred_check
        %p194 = pneg %p193
      $region30: #{tpu_custom_call.1} parent=5 // pred_check_branch
        %196 = sbr.rel (%p194) target = $region32
      $region31: #{tpu_custom_call.1} parent=5 // pred_region
        // Predicated region
        $region33: #{tpu_custom_call.1} parent=31 // pred_check
          %p197 = pneg %p48
        $region34: #{tpu_custom_call.1} parent=31 // pred_check_branch
          %199 = sbr.rel (%p197) target = $region36
        $region35: #{tpu_custom_call.1} parent=31 // pred_region
          %s200 = smul.u32 2, %s22
          %p201 = scmp.lt.s32.totalorder %s21, 1
          %s202 = scalar_select %p201, %s21, 1
          %p203 = scmp.lt.s32.totalorder %s200, 1
          %s204 = scalar_select %p203, %s200, 1
          %s205 = smul.addr %s202, 2
          %s206 = sadd.s32 %s204, %s205
          %s207 = smul.addr %s206, 4
          %s208 = scalar_lea.vmem %s0, %s207
          %s209 = smul.u32 2, %s22
        $region36: #{tpu_custom_call.1} parent=31 // pred_fallthru
          _
      $region32: #{tpu_custom_call.1} parent=5 // pred_fallthru
        _
      %p210 = scmp.le.s32.totalorder 1, %s14
      %p211 = scmp.lt.s32.totalorder %s14, 3
      %p212 = pnand %p210, %p211
      %p213 = pneg %p212
      // Predicated region
      $region37: #{tpu_custom_call.1} parent=5 // pred_check
        _
      $region38: #{tpu_custom_call.1} parent=5 // pred_check_branch
        %215 = sbr.rel (%p212) target = $region40
      $region39: #{tpu_custom_call.1} parent=5 // pred_region
        %s216 = ssub.s32 %s14, 1
        %s217 = smul.u32 2, %s24
        %p218 = scmp.lt.s32.totalorder %s23, 1
        %s219 = scalar_select %p218, %s23, 1
        %p220 = scmp.lt.s32.totalorder %s217, 1
        %s221 = scalar_select %p220, %s217, 1
        %s222 = smul.addr %s219, 2
        %s223 = sadd.s32 %s221, %s222
        %s224 = smul.addr %s223, 4
        %s225 = scalar_lea.vmem %s0, %s224
        %p226 = pneg %p54
        %p227 = pneg %p51
        %p228 = pneg %p75
        %p229 = pneg %p72
        %p230 = pneg %p96
        %p231 = pneg %p93
        %p232 = pneg %p117
        %p233 = pneg %p114
        %p234 = pneg %p138
        %p235 = pneg %p135
        %p236 = pneg %p166
        %p237 = pneg %p163
        %s238 = sand.u32 %s153, 1
        %s239 = scalar_lea.sflag [#allocation3], %s238
        %s240 = sand.u32 %s153, 1
        %s241 = smul.addr %s240, 8
        %s242 = scalar_lea.vmem [#allocation2], %s241
        %s243 = smul.u32 2, %s24
        %p244 = scmp.lt.s32.totalorder %s23, 1
        %s245 = scalar_select %p244, %s23, 1
        %p246 = scmp.lt.s32.totalorder %s243, 1
        %s247 = scalar_select %p246, %s243, 1
        %s248 = smul.addr %s245, 2
        %s249 = sadd.s32 %s247, %s248
        %s250 = smul.addr %s249, 4
        %s251 = scalar_lea.vmem %s0, %s250
        %s252 = smul.u32 2, %s24
        %s253 = smul.u32 2, %s24
        %v254 = vld [vmem:[%s1] sm:$0xff]
        %v255 = vld [vmem:[%s2] sm:$0xff]
        %v256 = vld [vmem:[%s3] sm:$0xf]
        %v257 = vld [vmem:[%s4] sm:$0xf]
        %v258 = vld [vmem:[%s251] sm:$0xff]
        %260 = vset.pattern.permute.xlu0 0
        %261 = vperm.xlu0 %260, %v255
        %v262 = vpop.permute.xlu0 %261
        %v265 = vcombine.high %v258, %v258
        %vm266 = vcmask 31744
        %v268 = vsel %vm266, %v254, 0
        %vm270 = vcmask 1043456
        %v271 = vsel %vm270, %v258, 0
        %v273 = vsel %vm270, %v265, 0
        %275 = vmatprep.subr.mxu0 %v273
        %276 = vmatpush1.msra.mxu0 %v271
        %277 = vmatprep.subr.mxu0 0.0
        %278 = vmatpush1.msra.mxu0 0.0
        %279 = vmatprep.subr.mxu0 0.0
        %280 = vmatpush1.msra.mxu0 0.0
        %281 = vmatprep.subr.mxu0 0.0
        %282 = vmatpush1.msra.mxu0 0.0
        %283 = vmatprep.subr.mxu0 0.0
        %284 = vmatpush1.msra.mxu0 0.0
        %285 = vmatprep.subr.mxu0 0.0
        %286 = vmatpush1.msra.mxu0 0.0
        %287 = vmatprep.subr.mxu0 0.0
        %288 = vmatpush1.msra.mxu0 0.0
        %289 = vmatprep.subr.mxu0 0.0
        %290 = vmatpush1.msra.mxu0 0.0
        %291 = vmatprep.subr.mxu0 0.0
        %292 = vmatpush1.msra.mxu0 0.0
        %293 = vmatprep.subr.mxu0 0.0
        %294 = vmatpush1.msra.mxu0 0.0
        %295 = vmatprep.subr.mxu0 0.0
        %296 = vmatpush1.msra.mxu0 0.0
        %297 = vmatprep.subr.mxu0 0.0
        %298 = vmatpush1.msra.mxu0 0.0
        %299 = vmatprep.subr.mxu0 0.0
        %300 = vmatpush1.msra.mxu0 0.0
        %301 = vmatprep.subr.mxu0 0.0
        %302 = vmatpush1.msra.mxu0 0.0
        %303 = vmatprep.subr.mxu0 0.0
        %304 = vmatpush1.msra.mxu0 0.0
        %305 = vmatprep.subr.mxu0 0.0
        %306 = vmatpush1.msra.mxu0 0.0
        %307 = vmatprep.subr.mxu0 0.0
        %308 = vmatpush1.msra.mxu0 0.0
        %309 = vmatprep.subr.mxu0 0.0
        %310 = vmatpush1.msra.mxu0 0.0
        %311 = vmatprep.subr.mxu0 0.0
        %312 = vmatpush1.msra.mxu0 0.0
        %313 = vmatprep.subr.mxu0 0.0
        %314 = vmatpush1.msra.mxu0 0.0
        %315 = vmatprep.subr.mxu0 0.0
        %316 = vmatpush1.msra.mxu0 0.0
        %317 = vmatprep.subr.mxu0 0.0
        %318 = vmatpush1.msra.mxu0 0.0
        %319 = vmatprep.subr.mxu0 0.0
        %320 = vmatpush1.msra.mxu0 0.0
        %321 = vmatprep.subr.mxu0 0.0
        %322 = vmatpush1.msra.mxu0 0.0
        %323 = vmatprep.subr.mxu0 0.0
        %324 = vmatpush1.msra.mxu0 0.0
        %325 = vmatprep.subr.mxu0 0.0
        %326 = vmatpush1.msra.mxu0 0.0
        %327 = vmatprep.subr.mxu0 0.0
        %328 = vmatpush1.msra.mxu0 0.0
        %329 = vmatprep.subr.mxu0 0.0
        %330 = vmatpush1.msra.mxu0 0.0
        %331 = vmatprep.subr.mxu0 0.0
        %332 = vmatpush1.msra.mxu0 0.0
        %333 = vmatprep.subr.mxu0 0.0
        %334 = vmatpush1.msra.mxu0 0.0
        %335 = vmatprep.subr.mxu0 0.0
        %336 = vmatpush1.msra.mxu0 0.0
        %337 = vmatprep.subr.mxu0 0.0
        %338 = vmatpush1.msra.mxu0 0.0
        %339 = vmatprep.mubr.f32.mxu0 0.0
        %340 = vmatmul.mubr.f32.gmra.mrb[0].mxu0 %v268
        %v341 = vpop.f32.mrb[0].mxu0
        %v342 = vadd.f32 %v262, %v341
        %v343 = vpop.f32.mrb[0].mxu0
        %v344 = vadd.f32 %v262, %v343
        %345 = vdwg.mxu0
        %v346 = vmax.f32 %v342, 0.0
        %v347 = vmax.f32 %v344, 0.0
        %v348 = vmin.f32 %v346, 6.0
        %v349 = vmin.f32 %v347, 6.0
        %351 = vset.pattern.permute.xlu0 0
        %352 = vperm.xlu0 %351, %v257
        %v353 = vpop.permute.xlu0 %352
        %vm355 = vcmask 64512
        %v357 = vsel %vm355, %v256, 0
        %359 = vmatprep.subr.mxu0 %v349
        %360 = vmatpush1.msra.mxu0 %v348
        %361 = vmatprep.subr.mxu0 0.0
        %362 = vmatpush1.msra.mxu0 0.0
        %363 = vmatprep.subr.mxu0 0.0
        %364 = vmatpush1.msra.mxu0 0.0
        %365 = vmatprep.subr.mxu0 0.0
        %366 = vmatpush1.msra.mxu0 0.0
        %367 = vmatprep.subr.mxu0 0.0
        %368 = vmatpush1.msra.mxu0 0.0
        %369 = vmatprep.subr.mxu0 0.0
        %370 = vmatpush1.msra.mxu0 0.0
        %371 = vmatprep.subr.mxu0 0.0
        %372 = vmatpush1.msra.mxu0 0.0
        %373 = vmatprep.subr.mxu0 0.0
        %374 = vmatpush1.msra.mxu0 0.0
        %375 = vmatprep.subr.mxu0 0.0
        %376 = vmatpush1.msra.mxu0 0.0
        %377 = vmatprep.subr.mxu0 0.0
        %378 = vmatpush1.msra.mxu0 0.0
        %379 = vmatprep.subr.mxu0 0.0
        %380 = vmatpush1.msra.mxu0 0.0
        %381 = vmatprep.subr.mxu0 0.0
        %382 = vmatpush1.msra.mxu0 0.0
        %383 = vmatprep.subr.mxu0 0.0
        %384 = vmatpush1.msra.mxu0 0.0
        %385 = vmatprep.subr.mxu0 0.0
        %386 = vmatpush1.msra.mxu0 0.0
        %387 = vmatprep.subr.mxu0 0.0
        %388 = vmatpush1.msra.mxu0 0.0
        %389 = vmatprep.subr.mxu0 0.0
        %390 = vmatpush1.msra.mxu0 0.0
        %391 = vmatprep.subr.mxu0 0.0
        %392 = vmatpush1.msra.mxu0 0.0
        %393 = vmatprep.subr.mxu0 0.0
        %394 = vmatpush1.msra.mxu0 0.0
        %395 = vmatprep.subr.mxu0 0.0
        %396 = vmatpush1.msra.mxu0 0.0
        %397 = vmatprep.subr.mxu0 0.0
        %398 = vmatpush1.msra.mxu0 0.0
        %399 = vmatprep.subr.mxu0 0.0
        %400 = vmatpush1.msra.mxu0 0.0
        %401 = vmatprep.subr.mxu0 0.0
        %402 = vmatpush1.msra.mxu0 0.0
        %403 = vmatprep.subr.mxu0 0.0
        %404 = vmatpush1.msra.mxu0 0.0
        %405 = vmatprep.subr.mxu0 0.0
        %406 = vmatpush1.msra.mxu0 0.0
        %407 = vmatprep.subr.mxu0 0.0
        %408 = vmatpush1.msra.mxu0 0.0
        %409 = vmatprep.subr.mxu0 0.0
        %410 = vmatpush1.msra.mxu0 0.0
        %411 = vmatprep.subr.mxu0 0.0
        %412 = vmatpush1.msra.mxu0 0.0
        %413 = vmatprep.subr.mxu0 0.0
        %414 = vmatpush1.msra.mxu0 0.0
        %415 = vmatprep.subr.mxu0 0.0
        %416 = vmatpush1.msra.mxu0 0.0
        %417 = vmatprep.subr.mxu0 0.0
        %418 = vmatpush1.msra.mxu0 0.0
        %419 = vmatprep.subr.mxu0 0.0
        %420 = vmatpush1.msra.mxu0 0.0
        %421 = vmatprep.subr.mxu0 0.0
        %422 = vmatpush1.msra.mxu0 0.0
        %423 = vmatprep.mubr.f32.mxu0 0.0
        %424 = vmatmul.mubr.f32.gmra.mrb[0].mxu0 %v357
        %v425 = vpop.f32.mrb[0].mxu0
        %v426 = vadd.f32 %v353, %v425
        %v427 = vpop.f32.mrb[0].mxu0
        %v428 = vadd.f32 %v353, %v427
        %429 = vdwg.mxu0
        %v432 = vcombine.low %v426, %v428
        %434 = vst [vmem:[%s242] sm:$0xff] %v432
        %s435 = sand.u32 %s153, 1
        %s436 = scalar_lea.sflag [#allocation3], %s435
        %s437 = sand.u32 %s153, 1
        %s438 = smul.addr %s437, 8
        %s439 = scalar_lea.vmem [#allocation2], %s438
        // Predicated region
        $region41: #{tpu_custom_call.1} parent=39 // pred_check
          %p440 = pneg %p163
        $region42: #{tpu_custom_call.1} parent=39 // pred_check_branch
          %442 = sbr.rel (%p440) target = $region44
        $region43: #{tpu_custom_call.1} parent=39 // pred_region
          %s443 = smul.u32 2, %s24
          %s445 = ssub.s32 128, 128
          %446 = vsyncadd %s436, %s445
          %s447 = smul.addr %s23, 2
          %s448 = sadd.s32 %s443, %s447
          %s449 = smul.addr %s448, 64
          %s450 = scalar_lea.hbm %s5, %s449
          %s452 = sshll.u32 %s439, 4
          %s453 = int_to_ptr.vmem [resolvable:$true] %s452
          %455 = dma.vmem_to_hbm [thread:$0]  %s453, 128, %s450, %s436
        $region44: #{tpu_custom_call.1} parent=39 // pred_fallthru
          _
      $region40: #{tpu_custom_call.1} parent=5 // pred_fallthru
        _
      %p456 = scmp.le.s32.totalorder 2, %s14
      // Predicated region
      $region45: #{tpu_custom_call.1} parent=5 // pred_check
        %p457 = pneg %p456
      $region46: #{tpu_custom_call.1} parent=5 // pred_check_branch
        %459 = sbr.rel (%p457) target = $region48
      $region47: #{tpu_custom_call.1} parent=5 // pred_region
        %s460 = ssub.s32 %s14, 2
        // Predicated region
        $region49: #{tpu_custom_call.1} parent=47 // pred_check
          %p461 = pneg %p169
        $region50: #{tpu_custom_call.1} parent=47 // pred_check_branch
          %463 = sbr.rel (%p461) target = $region52
        $region51: #{tpu_custom_call.1} parent=47 // pred_region
          %s464 = sand.u32 %s154, 1
          %s465 = scalar_lea.sflag [#allocation3], %s464
          %s466 = sand.u32 %s154, 1
          %s467 = smul.addr %s466, 8
          %s468 = scalar_lea.vmem [#allocation2], %s467
          %469 = dma.done %s465, 128
        $region52: #{tpu_custom_call.1} parent=47 // pred_fallthru
          _
      $region48: #{tpu_custom_call.1} parent=5 // pred_fallthru
        _
    $region6: #{tpu_custom_call.1} parent=1 // loop_footer
      %s18 = sadd.s32 1, %s14
    $region7: #{tpu_custom_call.1} parent=1 // loop_footer_branch
      %13 = sbr.rel target = $region3
    $region8: #{tpu_custom_call.1} parent=1 // loop_exit
      _
    %470 = vsyncpa [#allocation3], 1
    %s471 = scalar_lea.sflag [#allocation3], 1
    %472 = vsyncpa %s471, 1

</llo_original>
